<compile_context>
chip_gen: v7x
topology: tpu7x:2x2x1
jax: 0.10.0
libtpu: 0.0.40
codegen_flags: <defaults>
</compile_context>

<pallas_src>
import functools

import jax
import jax.numpy as jnp
from jax.experimental import pallas as pl
from jax.experimental.pallas import tpu as pltpu


def _round_up(n, m):
    return ((n + m - 1) // m) * m


def _decoder_kernel(x_ref, w1_ref, b1_ref, w2_ref, b2_ref, o_ref):
    # [TB, Din] @ [Din, H] -> f32 accumulate on the MXU.
    x = x_ref[...]
    h = jnp.dot(x, w1_ref[...], preferred_element_type=jnp.float32)      # [TB, H] f32
    # Epilogue stays f32 (v5e has no bf16 VPU path).
    h = h + b1_ref[...].astype(jnp.float32)
    h = jnp.maximum(h, 0.0)                                              # ReLU
    # Cast to the second weight's dtype only at the MXU boundary.
    y = jnp.dot(h.astype(w2_ref.dtype), w2_ref[...],
                preferred_element_type=jnp.float32)                      # [TB, Dout] f32
    y = y + b2_ref[...].astype(jnp.float32)
    o_ref[...] = y.astype(o_ref.dtype)


def _pick_block_b(B, Din, H, Dout, x_itemsize):
    """Pick the batch tile size (multiple of 8).

    VMEM model per tile row (lane-padded widths, since a [tb, Din] VMEM tile occupies
    ceil(Din/128)*128 lanes): double-buffered x and out tiles, plus the f32 hidden
    activation h and f32 y intermediates Mosaic materializes.  Budget stays well inside
    the ~32 MiB scoped-VMEM default, which is also safe on v7x (64 MiB physical VMEM).
    For B >= 16 the tile is capped at ~ceil(B/2) so there are >= 2 grid steps and the
    'parallel' batch axis can shard across v7x's two TensorCores.
    """
    din_l = _round_up(Din, 128)
    h_l = _round_up(H, 128)
    dout_l = _round_up(Dout, 128)
    per_row = 2 * (din_l + dout_l) * x_itemsize + (h_l + dout_l) * 4
    budget = 12 * 1024 * 1024
    tb = 4096
    while tb > 8 and tb * per_row > budget:
        tb //= 2
    if B >= 16:
        tb_split = _round_up(pl.cdiv(B, 2), 8)   # >= 2 grid steps when batch allows
    else:
        tb_split = _round_up(max(B, 1), 8)
    return max(8, min(tb, tb_split))


@functools.partial(jax.jit, static_argnames=("block_b",))
def decoder_forward(x, w1, b1, w2, b2, *, block_b=None):
    """x: [B, latent_dim + n_attrs]; w1: [Din, H]; b1: [1, H]; w2: [H, Dout]; b2: [1, Dout].

    Weights are stored [in_features, out_features] (transposed vs. PyTorch nn.Linear) so
    the kernel computes plain x @ W + b.
    """
    B, Din = x.shape
    H = w1.shape[1]
    Dout = w2.shape[1]
    x_itemsize = jnp.dtype(x.dtype).itemsize
    w_itemsize = jnp.dtype(w1.dtype).itemsize

    if block_b is None:
        block_b = _pick_block_b(B, Din, H, Dout, x_itemsize)
    block_b = max(8, _round_up(block_b, 8))
    num_tiles = pl.cdiv(B, block_b)   # partial last block handled by Pallas masking

    cost = pl.CostEstimate(
        flops=2 * B * Din * H + 2 * B * H * Dout,
        transcendentals=0,
        bytes_accessed=(B * Din * x_itemsize
                        + (Din * H + H + H * Dout + Dout) * w_itemsize
                        + B * Dout * x_itemsize),
    )

    resident = pl.Buffered(1)   # constant block index -> single buffer, no re-DMA

    out = pl.pallas_call(
        _decoder_kernel,
        out_shape=jax.ShapeDtypeStruct((B, Dout), x.dtype),
        grid_spec=pl.GridSpec(
            grid=(num_tiles,),
            in_specs=[
                pl.BlockSpec((block_b, Din), lambda i: (i, 0)),             # x follows batch tile
                pl.BlockSpec((Din, H), lambda i: (0, 0), pipeline_mode=resident),
                pl.BlockSpec((1, H), lambda i: (0, 0), pipeline_mode=resident),
                pl.BlockSpec((H, Dout), lambda i: (0, 0), pipeline_mode=resident),
                pl.BlockSpec((1, Dout), lambda i: (0, 0), pipeline_mode=resident),
            ],
            out_specs=pl.BlockSpec((block_b, Dout), lambda i: (i, 0)),
        ),
        compiler_params=pltpu.CompilerParams(
            dimension_semantics=("parallel",),          # shards across v7x's 2 TCs
            vmem_limit_bytes=32 * 1024 * 1024,          # safe on v5e/v6e/v7x
        ),
        cost_estimate=cost,
    )(x, w1, b1, w2, b2)

    return out


def init_decoder_params(key, latent_dim, hidden_dim, output_dim, n_attrs,
                        dtype=jnp.float32):
    """Deterministic init mimicking PyTorch nn.Linear default (uniform +/- 1/sqrt(fan_in))."""
    din = latent_dim + n_attrs
    k1, k2, k3, k4 = jax.random.split(key, 4)

    bound1 = 1.0 / jnp.sqrt(jnp.asarray(din, jnp.float32))
    w1 = jax.random.uniform(k1, (din, hidden_dim), jnp.float32, -bound1, bound1).astype(dtype)
    b1 = jax.random.uniform(k2, (1, hidden_dim), jnp.float32, -bound1, bound1).astype(dtype)

    bound2 = 1.0 / jnp.sqrt(jnp.asarray(hidden_dim, jnp.float32))
    w2 = jax.random.uniform(k3, (hidden_dim, output_dim), jnp.float32, -bound2, bound2).astype(dtype)
    b2 = jax.random.uniform(k4, (1, output_dim), jnp.float32, -bound2, bound2).astype(dtype)

    return w1, b1, w2, b2


def decoder_reference(x, w1, b1, w2, b2):
    """Pure-JAX reference matching the PyTorch forward."""
    h = jnp.maximum(jnp.dot(x, w1, preferred_element_type=jnp.float32)
                    + b1.astype(jnp.float32), 0.0)
    y = jnp.dot(h.astype(w2.dtype), w2, preferred_element_type=jnp.float32) \
        + b2.astype(jnp.float32)
    return y.astype(x.dtype)


if __name__ == "__main__":
    # Shapes consistent with the module's forward: x = [B, latent_dim + n_attrs].
    latent_dim = 16
    n_attrs = 4
    hidden_dim = 32
    output_dim = 64

    key = jax.random.PRNGKey(0)
    kx1, kx2, kp = jax.random.split(key, 3)

    w1, b1, w2, b2 = init_decoder_params(kp, latent_dim, hidden_dim,
                                         output_dim, n_attrs)

    # Case 1: tiny batch (single grid step, no padding anywhere).
    x_small = jax.random.normal(kx1, (8, latent_dim + n_attrs), jnp.float32)
    out_small = jax.block_until_ready(decoder_forward(x_small, w1, b1, w2, b2))
    ref_small = decoder_reference(x_small, w1, b1, w2, b2)
    assert out_small.shape == (8, output_dim)
    assert jnp.allclose(out_small, ref_small, atol=1e-5, rtol=1e-5), "small-batch mismatch"

    # Case 2: batch not a multiple of the tile -> exercises the masked partial last block
    # and the multi-step (>=2 tiles) grid path, with no wrapper-side padding of x.
    x_big = jax.random.normal(kx2, (300, latent_dim + n_attrs), jnp.float32)
    out_big = jax.block_until_ready(decoder_forward(x_big, w1, b1, w2, b2, block_b=128))
    ref_big = decoder_reference(x_big, w1, b1, w2, b2)
    assert out_big.shape == (300, output_dim)
    assert jnp.allclose(out_big, ref_big, atol=1e-5, rtol=1e-5), "tiled-batch mismatch"

    # Case 3: auto-picked block size (>=2 grid steps for megacore), partial last block.
    out_auto = jax.block_until_ready(decoder_forward(x_big, w1, b1, w2, b2))
    assert jnp.allclose(out_auto, ref_big, atol=1e-5, rtol=1e-5), "auto-tile mismatch"

    print("KERNEL_OK")
</pallas_src>

<mosaic_0001>
module attributes {stable_mosaic.version = 11 : i64} {
  func.func @_decoder_kernel(%arg0: i32, %arg1: memref<8x20xf32, #tpu.memory_space<vmem>>, %arg2: memref<20x32xf32, #tpu.memory_space<vmem>>, %arg3: memref<1x32xf32, #tpu.memory_space<vmem>>, %arg4: memref<32x64xf32, #tpu.memory_space<vmem>>, %arg5: memref<1x64xf32, #tpu.memory_space<vmem>>, %arg6: memref<8x64xf32, #tpu.memory_space<vmem>>) attributes {dimension_semantics = [#tpu.dimension_semantics<parallel>], iteration_bounds = array<i64: 1>, scalar_prefetch = 0 : i64, scratch_operands = 0 : i64, tpu.core_type = #tpu.core_type<tc>, window_params = [{transform_indices = @transform_0, window_bounds = array<i64: 8, 20>}, {pipeline_mode = #tpu.pipeline_mode<synchronous>, transform_indices = @transform_1, window_bounds = array<i64: 20, 32>}, {pipeline_mode = #tpu.pipeline_mode<synchronous>, transform_indices = @transform_2, window_bounds = array<i64: 1, 32>}, {pipeline_mode = #tpu.pipeline_mode<synchronous>, transform_indices = @transform_3, window_bounds = array<i64: 32, 64>}, {pipeline_mode = #tpu.pipeline_mode<synchronous>, transform_indices = @transform_4, window_bounds = array<i64: 1, 64>}, {transform_indices = @transform_5, window_bounds = array<i64: 8, 64>}]} {
    %c0 = arith.constant 0 : index
    %c0_0 = arith.constant 0 : index
    %0 = vector.load %arg1[%c0, %c0_0] : memref<8x20xf32, #tpu.memory_space<vmem>>, vector<8x20xf32>
    %c0_1 = arith.constant 0 : index
    %c0_2 = arith.constant 0 : index
    %1 = vector.load %arg2[%c0_1, %c0_2] : memref<20x32xf32, #tpu.memory_space<vmem>>, vector<20x32xf32>
    %cst = arith.constant dense<0.000000e+00> : vector<8x32xf32>
    %2 = tpu.matmul %0, %1, %cst {dimension_numbers = #tpu.dot_dimension_numbers<[1], [0], [0], [1], [0, 0, 1, 1], [], []>} : vector<8x20xf32>, vector<20x32xf32>, vector<8x32xf32> -> vector<8x32xf32>
    %c0_3 = arith.constant 0 : index
    %c0_4 = arith.constant 0 : index
    %3 = vector.load %arg3[%c0_3, %c0_4] : memref<1x32xf32, #tpu.memory_space<vmem>>, vector<1x32xf32>
    %4 = vector.broadcast %3 : vector<1x32xf32> to vector<8x32xf32>
    %5 = arith.addf %2, %4 : vector<8x32xf32>
    %cst_5 = arith.constant 0.000000e+00 : f32
    %6 = vector.broadcast %cst_5 : f32 to vector<8x32xf32>
    %7 = arith.maximumf %5, %6 : vector<8x32xf32>
    %c0_6 = arith.constant 0 : index
    %c0_7 = arith.constant 0 : index
    %8 = vector.load %arg4[%c0_6, %c0_7] : memref<32x64xf32, #tpu.memory_space<vmem>>, vector<32x64xf32>
    %cst_8 = arith.constant dense<0.000000e+00> : vector<8x64xf32>
    %9 = tpu.matmul %7, %8, %cst_8 {dimension_numbers = #tpu.dot_dimension_numbers<[1], [0], [0], [1], [0, 0, 1, 1], [], []>} : vector<8x32xf32>, vector<32x64xf32>, vector<8x64xf32> -> vector<8x64xf32>
    %c0_9 = arith.constant 0 : index
    %c0_10 = arith.constant 0 : index
    %10 = vector.load %arg5[%c0_9, %c0_10] : memref<1x64xf32, #tpu.memory_space<vmem>>, vector<1x64xf32>
    %11 = vector.broadcast %10 : vector<1x64xf32> to vector<8x64xf32>
    %12 = arith.addf %9, %11 : vector<8x64xf32>
    %c0_11 = arith.constant 0 : index
    %c0_12 = arith.constant 0 : index
    %13 = vector.load %arg6[%c0_11, %c0_12] : memref<8x64xf32, #tpu.memory_space<vmem>>, vector<8x64xf32>
    tpu.vector_store %arg6[%c0_11, %c0_12], %12 {strides = array<i32>} : memref<8x64xf32, #tpu.memory_space<vmem>>, vector<8x64xf32>,
    return
  }
  func.func @transform_0(%arg0: i32) -> (i32, i32) {
    %c0_i32 = arith.constant 0 : i32
    %c0_i32_0 = arith.constant 0 : i32
    return %arg0, %c0_i32 : i32, i32
  }
  func.func @transform_1(%arg0: i32) -> (i32, i32) {
    %c0_i32 = arith.constant 0 : i32
    %c0_i32_0 = arith.constant 0 : i32
    %c0_i32_1 = arith.constant 0 : i32
    return %c0_i32, %c0_i32_0 : i32, i32
  }
  func.func @transform_2(%arg0: i32) -> (i32, i32) {
    %c0_i32 = arith.constant 0 : i32
    %c0_i32_0 = arith.constant 0 : i32
    %c0_i32_1 = arith.constant 0 : i32
    return %c0_i32, %c0_i32_0 : i32, i32
  }
  func.func @transform_3(%arg0: i32) -> (i32, i32) {
    %c0_i32 = arith.constant 0 : i32
    %c0_i32_0 = arith.constant 0 : i32
    %c0_i32_1 = arith.constant 0 : i32
    return %c0_i32, %c0_i32_0 : i32, i32
  }
  func.func @transform_4(%arg0: i32) -> (i32, i32) {
    %c0_i32 = arith.constant 0 : i32
    %c0_i32_0 = arith.constant 0 : i32
    %c0_i32_1 = arith.constant 0 : i32
    return %c0_i32, %c0_i32_0 : i32, i32
  }
  func.func @transform_5(%arg0: i32) -> (i32, i32) {
    %c0_i32 = arith.constant 0 : i32
    %c0_i32_0 = arith.constant 0 : i32
    return %arg0, %c0_i32 : i32, i32
  }
}

</mosaic_0001>

<llo_original>
// kernel: decoder_forward.1
$region0: #{decoder_forward.1}
  #allocation0 [shape = 'u32[]', space=smem, size = 0x4, offset = 0x4, fixed_abs, tag = 'smem constant byte address 0x4 - core index']
  #allocation1 [shape = 'u32[144,128]{1,0:T(1,128)}', space=vmem, size = 0x12000, scoped, tag = 'internal scratch']
  %s0 = inlined_call_operand.hbm [shape: f32[8,20], index: 0, kind: input, shape index: {}]
  %s1 = inlined_call_operand.hbm [shape: f32[20,32], index: 1, kind: input, shape index: {}]
  %s2 = inlined_call_operand.vmem [shape: f32[1,32], index: 2, kind: input, shape index: {}]
  %s3 = inlined_call_operand.hbm [shape: f32[32,64], index: 3, kind: input, shape index: {}]
  %s4 = inlined_call_operand.vmem [shape: f32[1,64], index: 4, kind: input, shape index: {}]
  %s5 = inlined_call_operand.hbm [shape: f32[8,64], index: 5, kind: output, shape index: {}]
  %s6 = sld [smem:[#allocation0]]
  $region42: #{decoder_forward.1} parent=0
    _
  %s8 = ssub.s32 1, %s6
  %s9 = scalar_select 0, %s8, %s6
  $region1: #{decoder_forward.1} parent=0
    #allocation2 [shape = 'u8[4096]{0}', space=vmem, size = 0x1000, scoped, tag = 'input window, operand 0, single buffered']
    #allocation3 [shape = 's32[1]{0}', space=sflag, size = 0x4, scoped, tag = 'scoped memory for decoder_forward.1']
    #allocation4 [shape = 's32[1]{0}', space=sflag, size = 0x4, scoped, tag = 'scoped memory for decoder_forward.1']
    #allocation5 [shape = 'u8[12288]{0}', space=vmem, size = 0x3000, scoped, tag = 'input window, operand 1, single buffered']
    #allocation6 [shape = 's32[1]{0}', space=sflag, size = 0x4, scoped, tag = 'scoped memory for decoder_forward.1']
    #allocation7 [shape = 'u8[16384]{0}', space=vmem, size = 0x4000, scoped, tag = 'input window, operand 3, single buffered']
    #allocation8 [shape = 'u8[4096]{0}', space=vmem, size = 0x1000, scoped, tag = 'output window, operand 0, single buffered']
    %10 = vsyncpa [#allocation3], 0
    %11 = vsyncpa [#allocation6], 0
    %12 = vsyncpa [#allocation4], 0
    // Predicated region
    $region2: #{decoder_forward.1} parent=1 // pred_check
      _
    $region3: #{decoder_forward.1} parent=1 // pred_check_branch
      %14 = sbr.rel (0) target = $region5
    $region4: #{decoder_forward.1} parent=1 // pred_region
      %s16 = ssub.s32 128, 128
      %17 = vsyncadd [#allocation3], %s16
      %s19 = sshll.u32 [#allocation2], 4
      %s20 = int_to_ptr.vmem [resolvable:$true] %s19
      %22 = dma.hbm_to_vmem [thread:$0]  %s0, 128, %s20, [#allocation3]
    $region5: #{decoder_forward.1} parent=1 // pred_fallthru
      _
    // Predicated region
    $region6: #{decoder_forward.1} parent=1 // pred_check
      _
    $region7: #{decoder_forward.1} parent=1 // pred_check_branch
      %24 = sbr.rel (0) target = $region9
    $region8: #{decoder_forward.1} parent=1 // pred_region
      %s26 = ssub.s32 384, 384
      %27 = vsyncadd [#allocation6], %s26
      %s28 = sshll.u32 [#allocation5], 4
      %s29 = int_to_ptr.vmem [resolvable:$true] %s28
      %34 = dma.hbm_to_vmem [thread:$0]  %s1, 384, %s29, [#allocation6], 128, 128, 8
    $region9: #{decoder_forward.1} parent=1 // pred_fallthru
      _
    // Predicated region
    $region10: #{decoder_forward.1} parent=1 // pred_check
      _
    $region11: #{decoder_forward.1} parent=1 // pred_check_branch
      %36 = sbr.rel (0) target = $region13
    $region12: #{decoder_forward.1} parent=1 // pred_region
      _
    $region13: #{decoder_forward.1} parent=1 // pred_fallthru
      _
    // Predicated region
    $region14: #{decoder_forward.1} parent=1 // pred_check
      _
    $region15: #{decoder_forward.1} parent=1 // pred_check_branch
      %38 = sbr.rel (0) target = $region17
    $region16: #{decoder_forward.1} parent=1 // pred_region
      %s40 = ssub.s32 512, 512
      %41 = vsyncadd [#allocation6], %s40
      %s42 = sshll.u32 [#allocation7], 4
      %s43 = int_to_ptr.vmem [resolvable:$true] %s42
      %48 = dma.hbm_to_vmem [thread:$0]  %s3, 512, %s43, [#allocation6], 128, 128, 8
    $region17: #{decoder_forward.1} parent=1 // pred_fallthru
      _
    // Predicated region
    $region18: #{decoder_forward.1} parent=1 // pred_check
      _
    $region19: #{decoder_forward.1} parent=1 // pred_check_branch
      %50 = sbr.rel (0) target = $region21
    $region20: #{decoder_forward.1} parent=1 // pred_region
      _
    $region21: #{decoder_forward.1} parent=1 // pred_fallthru
      _
    // Predicated region
    $region22: #{decoder_forward.1} parent=1 // pred_check
      _
    $region23: #{decoder_forward.1} parent=1 // pred_check_branch
      %52 = sbr.rel (0) target = $region25
    $region24: #{decoder_forward.1} parent=1 // pred_region
      %53 = dma.done [#allocation3], 128
    $region25: #{decoder_forward.1} parent=1 // pred_fallthru
      _
    // Predicated region
    $region26: #{decoder_forward.1} parent=1 // pred_check
      _
    $region27: #{decoder_forward.1} parent=1 // pred_check_branch
      %55 = sbr.rel (0) target = $region29
    $region28: #{decoder_forward.1} parent=1 // pred_region
      %56 = dma.done [#allocation6], 384
    $region29: #{decoder_forward.1} parent=1 // pred_fallthru
      _
    // Predicated region
    $region30: #{decoder_forward.1} parent=1 // pred_check
      _
    $region31: #{decoder_forward.1} parent=1 // pred_check_branch
      %58 = sbr.rel (0) target = $region33
    $region32: #{decoder_forward.1} parent=1 // pred_region
      %59 = dma.done [#allocation6], 512
    $region33: #{decoder_forward.1} parent=1 // pred_fallthru
      _
    %v60 = vld [vmem:[#allocation2] sm:$0xff]
    %v61 = vld [vmem:[#allocation5] sm:$0xff]
    %v62 = vld [vmem:[#allocation5 + $0x8] sm:$0xff]
    %v63 = vld [vmem:[#allocation5 + $0x10] sm:$0xf]
    %v64 = vld [vmem:[%s2] sm:$0x1]
    %v66 = vlaneseq
    %v67 = vshrl.u32 %v66, 7
    %v68 = vsub.s32 0, %v67
    %v69 = vrot.slane %v64, %v68
    %vm71 = vcmask 162816
    %v73 = vsel %vm71, %v60, 0
    %vm75 = vcmask 1043456
    %v77 = vsel %vm75, %v63, 0
    %79 = vmatprep.subr.mxu0 0.0
    %80 = vmatpush1.msra.mxu0 %v61
    %81 = vmatprep.subr.mxu0 0.0
    %82 = vmatpush1.msra.mxu0 %v62
    %83 = vmatprep.subr.mxu0 0.0
    %84 = vmatpush1.msra.mxu0 %v77
    %85 = vmatprep.subr.mxu0 0.0
    %86 = vmatpush1.msra.mxu0 0.0
    %87 = vmatprep.subr.mxu0 0.0
    %88 = vmatpush1.msra.mxu0 0.0
    %89 = vmatprep.subr.mxu0 0.0
    %90 = vmatpush1.msra.mxu0 0.0
    %91 = vmatprep.subr.mxu0 0.0
    %92 = vmatpush1.msra.mxu0 0.0
    %93 = vmatprep.subr.mxu0 0.0
    %94 = vmatpush1.msra.mxu0 0.0
    %95 = vmatprep.subr.mxu0 0.0
    %96 = vmatpush1.msra.mxu0 0.0
    %97 = vmatprep.subr.mxu0 0.0
    %98 = vmatpush1.msra.mxu0 0.0
    %99 = vmatprep.subr.mxu0 0.0
    %100 = vmatpush1.msra.mxu0 0.0
    %101 = vmatprep.subr.mxu0 0.0
    %102 = vmatpush1.msra.mxu0 0.0
    %103 = vmatprep.subr.mxu0 0.0
    %104 = vmatpush1.msra.mxu0 0.0
    %105 = vmatprep.subr.mxu0 0.0
    %106 = vmatpush1.msra.mxu0 0.0
    %107 = vmatprep.subr.mxu0 0.0
    %108 = vmatpush1.msra.mxu0 0.0
    %109 = vmatprep.subr.mxu0 0.0
    %110 = vmatpush1.msra.mxu0 0.0
    %111 = vmatprep.subr.mxu0 0.0
    %112 = vmatpush1.msra.mxu0 0.0
    %113 = vmatprep.subr.mxu0 0.0
    %114 = vmatpush1.msra.mxu0 0.0
    %115 = vmatprep.subr.mxu0 0.0
    %116 = vmatpush1.msra.mxu0 0.0
    %117 = vmatprep.subr.mxu0 0.0
    %118 = vmatpush1.msra.mxu0 0.0
    %119 = vmatprep.subr.mxu0 0.0
    %120 = vmatpush1.msra.mxu0 0.0
    %121 = vmatprep.subr.mxu0 0.0
    %122 = vmatpush1.msra.mxu0 0.0
    %123 = vmatprep.subr.mxu0 0.0
    %124 = vmatpush1.msra.mxu0 0.0
    %125 = vmatprep.subr.mxu0 0.0
    %126 = vmatpush1.msra.mxu0 0.0
    %127 = vmatprep.subr.mxu0 0.0
    %128 = vmatpush1.msra.mxu0 0.0
    %129 = vmatprep.subr.mxu0 0.0
    %130 = vmatpush1.msra.mxu0 0.0
    %131 = vmatprep.subr.mxu0 0.0
    %132 = vmatpush1.msra.mxu0 0.0
    %133 = vmatprep.subr.mxu0 0.0
    %134 = vmatpush1.msra.mxu0 0.0
    %135 = vmatprep.subr.mxu0 0.0
    %136 = vmatpush1.msra.mxu0 0.0
    %137 = vmatprep.subr.mxu0 0.0
    %138 = vmatpush1.msra.mxu0 0.0
    %139 = vmatprep.subr.mxu0 0.0
    %140 = vmatpush1.msra.mxu0 0.0
    %141 = vmatprep.subr.mxu0 0.0
    %142 = vmatpush1.msra.mxu0 0.0
    %143 = vmatprep.mubr.f32.mxu0 0.0
    %144 = vmatmul.mubr.f32.gmra.mrb[0].mxu0 %v73
    %v145 = vpop.f32.mrb[0].mxu0
    %v146 = vadd.f32 %v69, %v145
    %v147 = vpop.f32.mrb[0].mxu0
    %148 = vdwg.mxu0
    %v149 = vmax.f32 %v146, 0.0
    %v150 = vld [vmem:[#allocation7] sm:$0xff]
    %v151 = vld [vmem:[#allocation7 + $0x8] sm:$0xff]
    %v152 = vld [vmem:[#allocation7 + $0x10] sm:$0xff]
    %v153 = vld [vmem:[#allocation7 + $0x18] sm:$0xff]
    %v154 = vld [vmem:[%s4] sm:$0x1]
    %v156 = vlaneseq
    %v157 = vshrl.u32 %v156, 7
    %v158 = vsub.s32 0, %v157
    %v159 = vrot.slane %v154, %v158
    %vm161 = vcmask 261120
    %v163 = vsel %vm161, %v149, 0
    %165 = vmatprep.subr.mxu0 0.0
    %166 = vmatpush1.msra.mxu0 %v150
    %167 = vmatprep.subr.mxu0 0.0
    %168 = vmatpush1.msra.mxu0 %v151
    %169 = vmatprep.subr.mxu0 0.0
    %170 = vmatpush1.msra.mxu0 %v152
    %171 = vmatprep.subr.mxu0 0.0
    %172 = vmatpush1.msra.mxu0 %v153
    %173 = vmatprep.subr.mxu0 0.0
    %174 = vmatpush1.msra.mxu0 0.0
    %175 = vmatprep.subr.mxu0 0.0
    %176 = vmatpush1.msra.mxu0 0.0
    %177 = vmatprep.subr.mxu0 0.0
    %178 = vmatpush1.msra.mxu0 0.0
    %179 = vmatprep.subr.mxu0 0.0
    %180 = vmatpush1.msra.mxu0 0.0
    %181 = vmatprep.subr.mxu0 0.0
    %182 = vmatpush1.msra.mxu0 0.0
    %183 = vmatprep.subr.mxu0 0.0
    %184 = vmatpush1.msra.mxu0 0.0
    %185 = vmatprep.subr.mxu0 0.0
    %186 = vmatpush1.msra.mxu0 0.0
    %187 = vmatprep.subr.mxu0 0.0
    %188 = vmatpush1.msra.mxu0 0.0
    %189 = vmatprep.subr.mxu0 0.0
    %190 = vmatpush1.msra.mxu0 0.0
    %191 = vmatprep.subr.mxu0 0.0
    %192 = vmatpush1.msra.mxu0 0.0
    %193 = vmatprep.subr.mxu0 0.0
    %194 = vmatpush1.msra.mxu0 0.0
    %195 = vmatprep.subr.mxu0 0.0
    %196 = vmatpush1.msra.mxu0 0.0
    %197 = vmatprep.subr.mxu0 0.0
    %198 = vmatpush1.msra.mxu0 0.0
    %199 = vmatprep.subr.mxu0 0.0
    %200 = vmatpush1.msra.mxu0 0.0
    %201 = vmatprep.subr.mxu0 0.0
    %202 = vmatpush1.msra.mxu0 0.0
    %203 = vmatprep.subr.mxu0 0.0
    %204 = vmatpush1.msra.mxu0 0.0
    %205 = vmatprep.subr.mxu0 0.0
    %206 = vmatpush1.msra.mxu0 0.0
    %207 = vmatprep.subr.mxu0 0.0
    %208 = vmatpush1.msra.mxu0 0.0
    %209 = vmatprep.subr.mxu0 0.0
    %210 = vmatpush1.msra.mxu0 0.0
    %211 = vmatprep.subr.mxu0 0.0
    %212 = vmatpush1.msra.mxu0 0.0
    %213 = vmatprep.subr.mxu0 0.0
    %214 = vmatpush1.msra.mxu0 0.0
    %215 = vmatprep.subr.mxu0 0.0
    %216 = vmatpush1.msra.mxu0 0.0
    %217 = vmatprep.subr.mxu0 0.0
    %218 = vmatpush1.msra.mxu0 0.0
    %219 = vmatprep.subr.mxu0 0.0
    %220 = vmatpush1.msra.mxu0 0.0
    %221 = vmatprep.subr.mxu0 0.0
    %222 = vmatpush1.msra.mxu0 0.0
    %223 = vmatprep.subr.mxu0 0.0
    %224 = vmatpush1.msra.mxu0 0.0
    %225 = vmatprep.subr.mxu0 0.0
    %226 = vmatpush1.msra.mxu0 0.0
    %227 = vmatprep.subr.mxu0 0.0
    %228 = vmatpush1.msra.mxu0 0.0
    %229 = vmatprep.mubr.f32.mxu0 0.0
    %230 = vmatmul.mubr.f32.gmra.mrb[0].mxu0 %v163
    %v231 = vpop.f32.mrb[0].mxu0
    %v232 = vadd.f32 %v159, %v231
    %v233 = vpop.f32.mrb[0].mxu0
    %234 = vdwg.mxu0
    %vm235 = vcmask 523264
    %236 = vst.msk [vmem:[#allocation8] sm:$0xff] %vm235, %v232
    // Predicated region
    $region34: #{decoder_forward.1} parent=1 // pred_check
      _
    $region35: #{decoder_forward.1} parent=1 // pred_check_branch
      %238 = sbr.rel (0) target = $region37
    $region36: #{decoder_forward.1} parent=1 // pred_region
      %s240 = ssub.s32 128, 128
      %241 = vsyncadd [#allocation4], %s240
      %s243 = sshll.u32 [#allocation8], 4
      %s244 = int_to_ptr.vmem [resolvable:$true] %s243
      %246 = dma.vmem_to_hbm [thread:$0]  %s244, 128, %s5, [#allocation4]
    $region37: #{decoder_forward.1} parent=1 // pred_fallthru
      _
    // Predicated region
    $region38: #{decoder_forward.1} parent=1 // pred_check
      _
    $region39: #{decoder_forward.1} parent=1 // pred_check_branch
      %248 = sbr.rel (0) target = $region41
    $region40: #{decoder_forward.1} parent=1 // pred_region
      %249 = dma.done [#allocation4], 128
    $region41: #{decoder_forward.1} parent=1 // pred_fallthru
      _
    %250 = vsyncpa [#allocation3], 1
    %251 = vsyncpa [#allocation6], 1
    %252 = vsyncpa [#allocation4], 1

</llo_original>
